<compile_context>
chip_gen: v6e
topology: v6e:2x2x1
jax: 0.10.0
libtpu: 0.0.40
codegen_flags: <defaults>
</compile_context>

<pallas_src>
import functools

import jax
import jax.numpy as jnp
from jax import lax
from jax.experimental import pallas as pl
from jax.experimental.pallas import tpu as pltpu


def mlp_kernel(x_ref, w1_ref, b1_ref, w2_ref, b2_ref, w3_ref, b3_ref, o_ref):
    # Layer 1: contract over the feature axis of the natural-layout x tile.
    # (32, 7) x (TB, 7) -> (32, TB); intermediates are lane-dense (batch on lanes).
    h1 = lax.dot_general(
        w1_ref[...], x_ref[...],
        dimension_numbers=(((1,), (1,)), ((), ())),
        preferred_element_type=jnp.float32)
    h1 = jnp.maximum(h1 + b1_ref[...], 0.0)
    # Layer 2: (16, 32) @ (32, TB) -> (16, TB)
    h2 = jnp.dot(w2_ref[...], h1, preferred_element_type=jnp.float32)
    h2 = jnp.maximum(h2 + b2_ref[...], 0.0)
    # Layer 3: (4, 16) @ (16, TB) -> (4, TB), no activation.
    h3 = jnp.dot(w3_ref[...], h2, preferred_element_type=jnp.float32)
    # Transpose the small result tile in-kernel so output is stored in the
    # natural (batch, 4) layout -> no separate XLA transpose pass over HBM.
    o_ref[...] = (h3 + b3_ref[...]).T.astype(o_ref.dtype)


@functools.partial(jax.jit, static_argnames=("tb",))
def binary_mlp(x, params, tb=8192):
    """x: (batch, 7) f32. Returns (batch, 4) f32."""
    w1, b1, w2, b2, w3, b3 = params
    batch, d_in = x.shape
    d_h1 = w1.shape[1]
    d_h2 = w2.shape[1]
    d_out = w3.shape[1]

    # Weights stored torch-style (fan_in, fan_out); the kernel wants (out, in)
    # so intermediates are lane-dense. These transposes are tiny (<= 32x16).
    w1t = w1.T.astype(jnp.float32)
    w2t = w2.T.astype(jnp.float32)
    w3t = w3.T.astype(jnp.float32)
    b1c = b1.reshape(d_h1, 1).astype(jnp.float32)
    b2c = b2.reshape(d_h2, 1).astype(jnp.float32)
    b3c = b3.reshape(d_out, 1).astype(jnp.float32)

    # No explicit zero-pad copy of x: cdiv grid + ragged last block. Rows are
    # independent end-to-end, so garbage in out-of-range rows never leaks into
    # valid output rows, and OOB output rows are dropped on store.
    tb_eff = min(tb, batch)           # full-extent block when batch < tb
    grid = (pl.cdiv(batch, tb_eff),)

    resident = lambda i: (0, 0)       # weights/biases VMEM-resident across steps

    out = pl.pallas_call(
        mlp_kernel,
        out_shape=jax.ShapeDtypeStruct((batch, d_out), jnp.float32),
        grid=grid,
        in_specs=[
            pl.BlockSpec((tb_eff, d_in), lambda i: (i, 0)),   # x, natural layout
            pl.BlockSpec(w1t.shape, resident),
            pl.BlockSpec(b1c.shape, resident),
            pl.BlockSpec(w2t.shape, resident),
            pl.BlockSpec(b2c.shape, resident),
            pl.BlockSpec(w3t.shape, resident),
            pl.BlockSpec(b3c.shape, resident),
        ],
        out_specs=pl.BlockSpec((tb_eff, d_out), lambda i: (i, 0)),
        compiler_params=pltpu.CompilerParams(
            dimension_semantics=("parallel",)),
    )(x.astype(jnp.float32), w1t, b1c, w2t, b2c, w3t, b3c)
    return out


def init_params(key):
    """Deterministic init mimicking torch.nn.Linear default U[-1/sqrt(in), 1/sqrt(in)].

    Stored torch-style: W as (fan_in, fan_out) so the reference computes x @ W + b.
    """
    dims = [(7, 32), (32, 16), (16, 4)]
    params = []
    for (fan_in, fan_out) in dims:
        key, kw, kb = jax.random.split(key, 3)
        bound = 1.0 / jnp.sqrt(float(fan_in))
        w = jax.random.uniform(kw, (fan_in, fan_out), jnp.float32, -bound, bound)
        b = jax.random.uniform(kb, (1, fan_out), jnp.float32, -bound, bound)
        params.extend([w, b])
    return tuple(params)


def reference(x, params):
    w1, b1, w2, b2, w3, b3 = params
    h = jnp.maximum(x @ w1 + b1, 0.0)
    h = jnp.maximum(h @ w2 + b2, 0.0)
    return h @ w3 + b3


if __name__ == "__main__":
    key = jax.random.PRNGKey(0)
    key, kx1, kx2 = jax.random.split(key, 3)
    params = init_params(key)

    # Small case (batch=8): single full-extent block, grid of 1.
    x_small = jax.random.normal(kx1, (8, 7), jnp.float32)
    out_small = jax.block_until_ready(binary_mlp(x_small, params))
    ref_small = reference(x_small, params)
    assert out_small.shape == (8, 4)
    assert jnp.allclose(out_small, ref_small, atol=2e-2, rtol=2e-2), float(
        jnp.max(jnp.abs(out_small - ref_small)))

    # Multi-step grid with a ragged last block (exercises the cdiv path that
    # replaced the explicit zero-pad copy): 200 rows, 64-row tiles -> 4 steps.
    x_big = jax.random.normal(kx2, (200, 7), jnp.float32)
    out_big = jax.block_until_ready(binary_mlp(x_big, params, tb=64))
    ref_big = reference(x_big, params)
    assert out_big.shape == (200, 4)
    assert jnp.allclose(out_big, ref_big, atol=2e-2, rtol=2e-2), float(
        jnp.max(jnp.abs(out_big - ref_big)))

    print("KERNEL_OK")
</pallas_src>

<mosaic_0001>
module attributes {stable_mosaic.version = 11 : i64} {
  func.func @mlp_kernel(%arg0: i32, %arg1: memref<8x7xf32, #tpu.memory_space<vmem>>, %arg2: memref<32x7xf32, #tpu.memory_space<vmem>>, %arg3: memref<32x1xf32, #tpu.memory_space<vmem>>, %arg4: memref<16x32xf32, #tpu.memory_space<vmem>>, %arg5: memref<16x1xf32, #tpu.memory_space<vmem>>, %arg6: memref<4x16xf32, #tpu.memory_space<vmem>>, %arg7: memref<4x1xf32, #tpu.memory_space<vmem>>, %arg8: memref<8x4xf32, #tpu.memory_space<vmem>>) attributes {dimension_semantics = [#tpu.dimension_semantics<parallel>], iteration_bounds = array<i64: 1>, scalar_prefetch = 0 : i64, scratch_operands = 0 : i64, tpu.core_type = #tpu.core_type<tc>, window_params = [{transform_indices = @transform_0, window_bounds = array<i64: 8, 7>}, {pipeline_mode = #tpu.pipeline_mode<synchronous>, transform_indices = @transform_1, window_bounds = array<i64: 32, 7>}, {pipeline_mode = #tpu.pipeline_mode<synchronous>, transform_indices = @transform_2, window_bounds = array<i64: 32, 1>}, {pipeline_mode = #tpu.pipeline_mode<synchronous>, transform_indices = @transform_3, window_bounds = array<i64: 16, 32>}, {pipeline_mode = #tpu.pipeline_mode<synchronous>, transform_indices = @transform_4, window_bounds = array<i64: 16, 1>}, {pipeline_mode = #tpu.pipeline_mode<synchronous>, transform_indices = @transform_5, window_bounds = array<i64: 4, 16>}, {pipeline_mode = #tpu.pipeline_mode<synchronous>, transform_indices = @transform_6, window_bounds = array<i64: 4, 1>}, {transform_indices = @transform_7, window_bounds = array<i64: 8, 4>}]} {
    %c0 = arith.constant 0 : index
    %c0_0 = arith.constant 0 : index
    %0 = vector.load %arg2[%c0, %c0_0] : memref<32x7xf32, #tpu.memory_space<vmem>>, vector<32x7xf32>
    %c0_1 = arith.constant 0 : index
    %c0_2 = arith.constant 0 : index
    %1 = vector.load %arg1[%c0_1, %c0_2] : memref<8x7xf32, #tpu.memory_space<vmem>>, vector<8x7xf32>
    %cst = arith.constant dense<0.000000e+00> : vector<32x8xf32>
    %2 = tpu.matmul %0, %1, %cst {dimension_numbers = #tpu.dot_dimension_numbers<[1], [1], [0], [0], [0, 0, 1, 0], [], []>} : vector<32x7xf32>, vector<8x7xf32>, vector<32x8xf32> -> vector<32x8xf32>
    %c0_3 = arith.constant 0 : index
    %c0_4 = arith.constant 0 : index
    %3 = vector.load %arg3[%c0_3, %c0_4] : memref<32x1xf32, #tpu.memory_space<vmem>>, vector<32x1xf32>
    %4 = vector.broadcast %3 : vector<32x1xf32> to vector<32x8xf32>
    %5 = arith.addf %2, %4 : vector<32x8xf32>
    %cst_5 = arith.constant 0.000000e+00 : f32
    %6 = vector.broadcast %cst_5 : f32 to vector<32x8xf32>
    %7 = arith.maximumf %5, %6 : vector<32x8xf32>
    %c0_6 = arith.constant 0 : index
    %c0_7 = arith.constant 0 : index
    %8 = vector.load %arg4[%c0_6, %c0_7] : memref<16x32xf32, #tpu.memory_space<vmem>>, vector<16x32xf32>
    %cst_8 = arith.constant dense<0.000000e+00> : vector<16x8xf32>
    %9 = tpu.matmul %8, %7, %cst_8 {dimension_numbers = #tpu.dot_dimension_numbers<[1], [0], [0], [1], [0, 0, 1, 1], [], []>} : vector<16x32xf32>, vector<32x8xf32>, vector<16x8xf32> -> vector<16x8xf32>
    %c0_9 = arith.constant 0 : index
    %c0_10 = arith.constant 0 : index
    %10 = vector.load %arg5[%c0_9, %c0_10] : memref<16x1xf32, #tpu.memory_space<vmem>>, vector<16x1xf32>
    %11 = vector.broadcast %10 : vector<16x1xf32> to vector<16x8xf32>
    %12 = arith.addf %9, %11 : vector<16x8xf32>
    %cst_11 = arith.constant 0.000000e+00 : f32
    %13 = vector.broadcast %cst_11 : f32 to vector<16x8xf32>
    %14 = arith.maximumf %12, %13 : vector<16x8xf32>
    %c0_12 = arith.constant 0 : index
    %c0_13 = arith.constant 0 : index
    %15 = vector.load %arg6[%c0_12, %c0_13] : memref<4x16xf32, #tpu.memory_space<vmem>>, vector<4x16xf32>
    %cst_14 = arith.constant dense<0.000000e+00> : vector<4x8xf32>
    %16 = tpu.matmul %15, %14, %cst_14 {dimension_numbers = #tpu.dot_dimension_numbers<[1], [0], [0], [1], [0, 0, 1, 1], [], []>} : vector<4x16xf32>, vector<16x8xf32>, vector<4x8xf32> -> vector<4x8xf32>
    %c0_15 = arith.constant 0 : index
    %c0_16 = arith.constant 0 : index
    %17 = vector.load %arg7[%c0_15, %c0_16] : memref<4x1xf32, #tpu.memory_space<vmem>>, vector<4x1xf32>
    %18 = vector.broadcast %17 : vector<4x1xf32> to vector<4x8xf32>
    %19 = arith.addf %16, %18 : vector<4x8xf32>
    %20 = tpu.transpose %19, [1, 0] : vector<4x8xf32> -> vector<8x4xf32>
    %c0_17 = arith.constant 0 : index
    %c0_18 = arith.constant 0 : index
    %21 = vector.load %arg8[%c0_17, %c0_18] : memref<8x4xf32, #tpu.memory_space<vmem>>, vector<8x4xf32>
    tpu.vector_store %arg8[%c0_17, %c0_18], %20 {strides = array<i32>} : memref<8x4xf32, #tpu.memory_space<vmem>>, vector<8x4xf32>,
    return
  }
  func.func @transform_0(%arg0: i32) -> (i32, i32) {
    %c0_i32 = arith.constant 0 : i32
    %c0_i32_0 = arith.constant 0 : i32
    return %arg0, %c0_i32 : i32, i32
  }
  func.func @transform_1(%arg0: i32) -> (i32, i32) {
    %c0_i32 = arith.constant 0 : i32
    %c0_i32_0 = arith.constant 0 : i32
    %c0_i32_1 = arith.constant 0 : i32
    return %c0_i32, %c0_i32_0 : i32, i32
  }
  func.func @transform_2(%arg0: i32) -> (i32, i32) {
    %c0_i32 = arith.constant 0 : i32
    %c0_i32_0 = arith.constant 0 : i32
    %c0_i32_1 = arith.constant 0 : i32
    return %c0_i32, %c0_i32_0 : i32, i32
  }
  func.func @transform_3(%arg0: i32) -> (i32, i32) {
    %c0_i32 = arith.constant 0 : i32
    %c0_i32_0 = arith.constant 0 : i32
    %c0_i32_1 = arith.constant 0 : i32
    return %c0_i32, %c0_i32_0 : i32, i32
  }
  func.func @transform_4(%arg0: i32) -> (i32, i32) {
    %c0_i32 = arith.constant 0 : i32
    %c0_i32_0 = arith.constant 0 : i32
    %c0_i32_1 = arith.constant 0 : i32
    return %c0_i32, %c0_i32_0 : i32, i32
  }
  func.func @transform_5(%arg0: i32) -> (i32, i32) {
    %c0_i32 = arith.constant 0 : i32
    %c0_i32_0 = arith.constant 0 : i32
    %c0_i32_1 = arith.constant 0 : i32
    return %c0_i32, %c0_i32_0 : i32, i32
  }
  func.func @transform_6(%arg0: i32) -> (i32, i32) {
    %c0_i32 = arith.constant 0 : i32
    %c0_i32_0 = arith.constant 0 : i32
    %c0_i32_1 = arith.constant 0 : i32
    return %c0_i32, %c0_i32_0 : i32, i32
  }
  func.func @transform_7(%arg0: i32) -> (i32, i32) {
    %c0_i32 = arith.constant 0 : i32
    %c0_i32_0 = arith.constant 0 : i32
    return %arg0, %c0_i32 : i32, i32
  }
}

</mosaic_0001>

<llo_original>
// kernel: binary_mlp.1
$region0: #{binary_mlp.1}
  #allocation0 [shape = 'u32[]', space=smem, size = 0x4, offset = 0x4, fixed_abs, tag = 'smem constant byte address 0x4 - core index']
  #allocation1 [shape = 'u32[144,128]{1,0:T(1,128)}', space=vmem, size = 0x12000, scoped, tag = 'internal scratch']
  %s0 = inlined_call_operand.vmem [shape: f32[8,7], index: 0, kind: input, shape index: {}]
  %s1 = inlined_call_operand.vmem [shape: f32[32,7], index: 1, kind: input, shape index: {}]
  %s2 = inlined_call_operand.vmem [shape: f32[32,1], index: 2, kind: input, shape index: {}]
  %s3 = inlined_call_operand.vmem [shape: f32[16,32], index: 3, kind: input, shape index: {}]
  %s4 = inlined_call_operand.vmem [shape: f32[16,1], index: 4, kind: input, shape index: {}]
  %s5 = inlined_call_operand.vmem [shape: f32[4,16], index: 5, kind: input, shape index: {}]
  %s6 = inlined_call_operand.vmem [shape: f32[4,1], index: 6, kind: input, shape index: {}]
  %s7 = inlined_call_operand.vmem [shape: f32[8,4], index: 7, kind: output, shape index: {}]
  %s8 = sld [smem:[#allocation0]]
  $region38: #{binary_mlp.1} parent=0
    _
  %s10 = ssub.s32 1, %s8
  %s11 = scalar_select 0, %s10, %s8
  // Predicated region
  $region2: #{binary_mlp.1} parent=0 // pred_check
    _
  $region3: #{binary_mlp.1} parent=0 // pred_check_branch
    %13 = sbr.rel (0) target = $region5
  $region4: #{binary_mlp.1} parent=0 // pred_region
    _
  $region5: #{binary_mlp.1} parent=0 // pred_fallthru
    _
  // Predicated region
  $region6: #{binary_mlp.1} parent=0 // pred_check
    _
  $region7: #{binary_mlp.1} parent=0 // pred_check_branch
    %15 = sbr.rel (0) target = $region9
  $region8: #{binary_mlp.1} parent=0 // pred_region
    _
  $region9: #{binary_mlp.1} parent=0 // pred_fallthru
    _
  // Predicated region
  $region10: #{binary_mlp.1} parent=0 // pred_check
    _
  $region11: #{binary_mlp.1} parent=0 // pred_check_branch
    %17 = sbr.rel (0) target = $region13
  $region12: #{binary_mlp.1} parent=0 // pred_region
    _
  $region13: #{binary_mlp.1} parent=0 // pred_fallthru
    _
  // Predicated region
  $region14: #{binary_mlp.1} parent=0 // pred_check
    _
  $region15: #{binary_mlp.1} parent=0 // pred_check_branch
    %19 = sbr.rel (0) target = $region17
  $region16: #{binary_mlp.1} parent=0 // pred_region
    _
  $region17: #{binary_mlp.1} parent=0 // pred_fallthru
    _
  // Predicated region
  $region18: #{binary_mlp.1} parent=0 // pred_check
    _
  $region19: #{binary_mlp.1} parent=0 // pred_check_branch
    %21 = sbr.rel (0) target = $region21
  $region20: #{binary_mlp.1} parent=0 // pred_region
    _
  $region21: #{binary_mlp.1} parent=0 // pred_fallthru
    _
  // Predicated region
  $region22: #{binary_mlp.1} parent=0 // pred_check
    _
  $region23: #{binary_mlp.1} parent=0 // pred_check_branch
    %23 = sbr.rel (0) target = $region25
  $region24: #{binary_mlp.1} parent=0 // pred_region
    _
  $region25: #{binary_mlp.1} parent=0 // pred_fallthru
    _
  // Predicated region
  $region26: #{binary_mlp.1} parent=0 // pred_check
    _
  $region27: #{binary_mlp.1} parent=0 // pred_check_branch
    %25 = sbr.rel (0) target = $region29
  $region28: #{binary_mlp.1} parent=0 // pred_region
    _
  $region29: #{binary_mlp.1} parent=0 // pred_fallthru
    _
  %v26 = vld [vmem:[%s1] sm:$0xff]
  %v27 = vld [vmem:[%s1 + $0x8] sm:$0xff]
  %v28 = vld [vmem:[%s1 + $0x10] sm:$0xff]
  %v29 = vld [vmem:[%s1 + $0x18] sm:$0xff]
  %v30 = vld [vmem:[%s0] sm:$0xff]
  %v31 = vld [vmem:[%s2] sm:$0xff]
  %v32 = vld [vmem:[%s2 + $0x8] sm:$0xff]
  %v33 = vld [vmem:[%s2 + $0x10] sm:$0xff]
  %v34 = vld [vmem:[%s2 + $0x18] sm:$0xff]
  %36 = vset.pattern.permute.xlu0 0
  %37 = vperm.xlu0 %36, %v31
  %v38 = vpop.permute.xlu0 %37
  %41 = vset.pattern.permute.xlu0 0
  %42 = vperm.xlu0 %41, %v32
  %v43 = vpop.permute.xlu0 %42
  %46 = vset.pattern.permute.xlu0 0
  %47 = vperm.xlu0 %46, %v33
  %v48 = vpop.permute.xlu0 %47
  %51 = vset.pattern.permute.xlu0 0
  %52 = vperm.xlu0 %51, %v34
  %v53 = vpop.permute.xlu0 %52
  %vm55 = vcmask 56320
  %v57 = vsel %vm55, %v26, 0
  %v60 = vsel %vm55, %v27, 0
  %v63 = vsel %vm55, %v28, 0
  %v66 = vsel %vm55, %v29, 0
  %v69 = vsel %vm55, %v30, 0
  %71 = vmatprep.subr.mxu0 0.0
  %72 = vmatpush1.xpose.msra.mxu0 0.0
  %73 = vmatprep.subr.mxu0 0.0
  %74 = vmatpush1.xpose.msra.mxu0 0.0
  %75 = vmatprep.subr.mxu0 0.0
  %76 = vmatpush1.xpose.msra.mxu0 0.0
  %77 = vmatprep.subr.mxu0 0.0
  %78 = vmatpush1.xpose.msra.mxu0 0.0
  %79 = vmatprep.subr.mxu0 0.0
  %80 = vmatpush1.xpose.msra.mxu0 0.0
  %81 = vmatprep.subr.mxu0 0.0
  %82 = vmatpush1.xpose.msra.mxu0 0.0
  %83 = vmatprep.subr.mxu0 0.0
  %84 = vmatpush1.xpose.msra.mxu0 0.0
  %85 = vmatprep.subr.mxu0 0.0
  %86 = vmatpush1.xpose.msra.mxu0 0.0
  %87 = vmatprep.subr.mxu0 0.0
  %88 = vmatpush1.xpose.msra.mxu0 0.0
  %89 = vmatprep.subr.mxu0 0.0
  %90 = vmatpush1.xpose.msra.mxu0 0.0
  %91 = vmatprep.subr.mxu0 0.0
  %92 = vmatpush1.xpose.msra.mxu0 0.0
  %93 = vmatprep.subr.mxu0 0.0
  %94 = vmatpush1.xpose.msra.mxu0 0.0
  %95 = vmatprep.subr.mxu0 0.0
  %96 = vmatpush1.xpose.msra.mxu0 0.0
  %97 = vmatprep.subr.mxu0 0.0
  %98 = vmatpush1.xpose.msra.mxu0 0.0
  %99 = vmatprep.subr.mxu0 0.0
  %100 = vmatpush1.xpose.msra.mxu0 0.0
  %101 = vmatprep.subr.mxu0 0.0
  %102 = vmatpush1.xpose.msra.mxu0 %v69
  %103 = vmatprep.subr.mxu0 0.0
  %104 = vmatpush2.xpose.msra.mxu0 0.0
  %105 = vmatprep.subr.mxu0 0.0
  %106 = vmatpush2.xpose.msra.mxu0 0.0
  %107 = vmatprep.subr.mxu0 0.0
  %108 = vmatpush2.xpose.msra.mxu0 0.0
  %109 = vmatprep.subr.mxu0 0.0
  %110 = vmatpush2.xpose.msra.mxu0 0.0
  %111 = vmatprep.subr.mxu0 0.0
  %112 = vmatpush2.xpose.msra.mxu0 0.0
  %113 = vmatprep.subr.mxu0 0.0
  %114 = vmatpush2.xpose.msra.mxu0 0.0
  %115 = vmatprep.subr.mxu0 0.0
  %116 = vmatpush2.xpose.msra.mxu0 0.0
  %117 = vmatprep.subr.mxu0 0.0
  %118 = vmatpush2.xpose.msra.mxu0 0.0
  %119 = vmatprep.subr.mxu0 0.0
  %120 = vmatpush2.xpose.msra.mxu0 0.0
  %121 = vmatprep.subr.mxu0 0.0
  %122 = vmatpush2.xpose.msra.mxu0 0.0
  %123 = vmatprep.subr.mxu0 0.0
  %124 = vmatpush2.xpose.msra.mxu0 0.0
  %125 = vmatprep.subr.mxu0 0.0
  %126 = vmatpush2.xpose.msra.mxu0 0.0
  %127 = vmatprep.subr.mxu0 0.0
  %128 = vmatpush2.xpose.msra.mxu0 0.0
  %129 = vmatprep.subr.mxu0 0.0
  %130 = vmatpush2.xpose.msra.mxu0 0.0
  %131 = vmatprep.subr.mxu0 0.0
  %132 = vmatpush2.xpose.msra.mxu0 0.0
  %133 = vmatprep.subr.mxu0 0.0
  %134 = vmatpush2.xpose.msra.mxu0 0.0
  %135 = vmatprep.mubr.f32.mxu0 0.0
  %136 = vmatmul.mubr.f32.gmra.mxu0 %v57
  %v137 = vpop.f32.mrf.mxu0
  %v138 = vadd.f32 %v38, %v137
  %v139 = vpop.f32.mrf.mxu0
  %140 = vmatprep.mubr.f32.mxu0 0.0
  %141 = vmatmul.mubr.f32.gmra.mxu0 %v60
  %v142 = vpop.f32.mrf.mxu0
  %v143 = vadd.f32 %v43, %v142
  %v144 = vpop.f32.mrf.mxu0
  %145 = vmatprep.mubr.f32.mxu0 0.0
  %146 = vmatmul.mubr.f32.gmra.mxu0 %v63
  %v147 = vpop.f32.mrf.mxu0
  %v148 = vadd.f32 %v48, %v147
  %v149 = vpop.f32.mrf.mxu0
  %150 = vmatprep.mubr.f32.mxu0 0.0
  %151 = vmatmul.mubr.f32.gmra.mxu0 %v66
  %v152 = vpop.f32.mrf.mxu0
  %v153 = vadd.f32 %v53, %v152
  %v154 = vpop.f32.mrf.mxu0
  %155 = vdwg.mxu0
  %v156 = vmax.f32 %v138, 0.0
  %v157 = vmax.f32 %v143, 0.0
  %v158 = vmax.f32 %v148, 0.0
  %v159 = vmax.f32 %v153, 0.0
  %v160 = vld [vmem:[%s3] sm:$0xff]
  %v161 = vld [vmem:[%s3 + $0x8] sm:$0xff]
  %v162 = vld [vmem:[%s4] sm:$0xff]
  %v163 = vld [vmem:[%s4 + $0x8] sm:$0xff]
  %165 = vset.pattern.permute.xlu0 0
  %166 = vperm.xlu0 %165, %v162
  %v167 = vpop.permute.xlu0 %166
  %170 = vset.pattern.permute.xlu0 0
  %171 = vperm.xlu0 %170, %v163
  %v172 = vpop.permute.xlu0 %171
  %vm174 = vcmask 261120
  %v176 = vsel %vm174, %v160, 0
  %v179 = vsel %vm174, %v161, 0
  %181 = vmatprep.subr.mxu0 0.0
  %182 = vmatpush1.msra.mxu0 0.0
  %183 = vmatprep.subr.mxu0 0.0
  %184 = vmatpush1.msra.mxu0 0.0
  %185 = vmatprep.subr.mxu0 0.0
  %186 = vmatpush1.msra.mxu0 0.0
  %187 = vmatprep.subr.mxu0 0.0
  %188 = vmatpush1.msra.mxu0 0.0
  %189 = vmatprep.subr.mxu0 0.0
  %190 = vmatpush1.msra.mxu0 0.0
  %191 = vmatprep.subr.mxu0 0.0
  %192 = vmatpush1.msra.mxu0 0.0
  %193 = vmatprep.subr.mxu0 0.0
  %194 = vmatpush1.msra.mxu0 0.0
  %195 = vmatprep.subr.mxu0 0.0
  %196 = vmatpush1.msra.mxu0 0.0
  %197 = vmatprep.subr.mxu0 0.0
  %198 = vmatpush1.msra.mxu0 0.0
  %199 = vmatprep.subr.mxu0 0.0
  %200 = vmatpush1.msra.mxu0 0.0
  %201 = vmatprep.subr.mxu0 0.0
  %202 = vmatpush1.msra.mxu0 0.0
  %203 = vmatprep.subr.mxu0 0.0
  %204 = vmatpush1.msra.mxu0 0.0
  %205 = vmatprep.subr.mxu0 0.0
  %206 = vmatpush1.msra.mxu0 %v159
  %207 = vmatprep.subr.mxu0 0.0
  %208 = vmatpush1.msra.mxu0 %v158
  %209 = vmatprep.subr.mxu0 0.0
  %210 = vmatpush1.msra.mxu0 %v157
  %211 = vmatprep.subr.mxu0 0.0
  %212 = vmatpush1.msra.mxu0 %v156
  %213 = vmatprep.subr.mxu0 0.0
  %214 = vmatpush2.msra.mxu0 0.0
  %215 = vmatprep.subr.mxu0 0.0
  %216 = vmatpush2.msra.mxu0 0.0
  %217 = vmatprep.subr.mxu0 0.0
  %218 = vmatpush2.msra.mxu0 0.0
  %219 = vmatprep.subr.mxu0 0.0
  %220 = vmatpush2.msra.mxu0 0.0
  %221 = vmatprep.subr.mxu0 0.0
  %222 = vmatpush2.msra.mxu0 0.0
  %223 = vmatprep.subr.mxu0 0.0
  %224 = vmatpush2.msra.mxu0 0.0
  %225 = vmatprep.subr.mxu0 0.0
  %226 = vmatpush2.msra.mxu0 0.0
  %227 = vmatprep.subr.mxu0 0.0
  %228 = vmatpush2.msra.mxu0 0.0
  %229 = vmatprep.subr.mxu0 0.0
  %230 = vmatpush2.msra.mxu0 0.0
  %231 = vmatprep.subr.mxu0 0.0
  %232 = vmatpush2.msra.mxu0 0.0
  %233 = vmatprep.subr.mxu0 0.0
  %234 = vmatpush2.msra.mxu0 0.0
  %235 = vmatprep.subr.mxu0 0.0
  %236 = vmatpush2.msra.mxu0 0.0
  %237 = vmatprep.subr.mxu0 0.0
  %238 = vmatpush2.msra.mxu0 0.0
  %239 = vmatprep.subr.mxu0 0.0
  %240 = vmatpush2.msra.mxu0 0.0
  %241 = vmatprep.subr.mxu0 0.0
  %242 = vmatpush2.msra.mxu0 0.0
  %243 = vmatprep.subr.mxu0 0.0
  %244 = vmatpush2.msra.mxu0 0.0
  %245 = vmatprep.mubr.f32.mxu0 0.0
  %246 = vmatmul.mubr.f32.gmra.mxu0 %v176
  %v247 = vpop.f32.mrf.mxu0
  %v248 = vadd.f32 %v167, %v247
  %v249 = vpop.f32.mrf.mxu0
  %250 = vmatprep.mubr.f32.mxu0 0.0
  %251 = vmatmul.mubr.f32.gmra.mxu0 %v179
  %v252 = vpop.f32.mrf.mxu0
  %v253 = vadd.f32 %v172, %v252
  %v254 = vpop.f32.mrf.mxu0
  %255 = vdwg.mxu0
  %v256 = vmax.f32 %v248, 0.0
  %v257 = vmax.f32 %v253, 0.0
  %v258 = vld [vmem:[%s5] sm:$0xf]
  %v259 = vld [vmem:[%s6] sm:$0xf]
  %261 = vset.pattern.permute.xlu0 0
  %262 = vperm.xlu0 %261, %v259
  %v263 = vpop.permute.xlu0 %262
  %vm265 = vcmask 130048
  %v267 = vsel %vm265, %v258, 0
  %269 = vmatprep.subr.mxu0 0.0
  %270 = vmatpush1.msra.mxu0 0.0
  %271 = vmatprep.subr.mxu0 0.0
  %272 = vmatpush1.msra.mxu0 0.0
  %273 = vmatprep.subr.mxu0 0.0
  %274 = vmatpush1.msra.mxu0 0.0
  %275 = vmatprep.subr.mxu0 0.0
  %276 = vmatpush1.msra.mxu0 0.0
  %277 = vmatprep.subr.mxu0 0.0
  %278 = vmatpush1.msra.mxu0 0.0
  %279 = vmatprep.subr.mxu0 0.0
  %280 = vmatpush1.msra.mxu0 0.0
  %281 = vmatprep.subr.mxu0 0.0
  %282 = vmatpush1.msra.mxu0 0.0
  %283 = vmatprep.subr.mxu0 0.0
  %284 = vmatpush1.msra.mxu0 0.0
  %285 = vmatprep.subr.mxu0 0.0
  %286 = vmatpush1.msra.mxu0 0.0
  %287 = vmatprep.subr.mxu0 0.0
  %288 = vmatpush1.msra.mxu0 0.0
  %289 = vmatprep.subr.mxu0 0.0
  %290 = vmatpush1.msra.mxu0 0.0
  %291 = vmatprep.subr.mxu0 0.0
  %292 = vmatpush1.msra.mxu0 0.0
  %293 = vmatprep.subr.mxu0 0.0
  %294 = vmatpush1.msra.mxu0 0.0
  %295 = vmatprep.subr.mxu0 0.0
  %296 = vmatpush1.msra.mxu0 0.0
  %297 = vmatprep.subr.mxu0 0.0
  %298 = vmatpush1.msra.mxu0 %v257
  %299 = vmatprep.subr.mxu0 0.0
  %300 = vmatpush1.msra.mxu0 %v256
  %301 = vmatprep.subr.mxu0 0.0
  %302 = vmatpush2.msra.mxu0 0.0
  %303 = vmatprep.subr.mxu0 0.0
  %304 = vmatpush2.msra.mxu0 0.0
  %305 = vmatprep.subr.mxu0 0.0
  %306 = vmatpush2.msra.mxu0 0.0
  %307 = vmatprep.subr.mxu0 0.0
  %308 = vmatpush2.msra.mxu0 0.0
  %309 = vmatprep.subr.mxu0 0.0
  %310 = vmatpush2.msra.mxu0 0.0
  %311 = vmatprep.subr.mxu0 0.0
  %312 = vmatpush2.msra.mxu0 0.0
  %313 = vmatprep.subr.mxu0 0.0
  %314 = vmatpush2.msra.mxu0 0.0
  %315 = vmatprep.subr.mxu0 0.0
  %316 = vmatpush2.msra.mxu0 0.0
  %317 = vmatprep.subr.mxu0 0.0
  %318 = vmatpush2.msra.mxu0 0.0
  %319 = vmatprep.subr.mxu0 0.0
  %320 = vmatpush2.msra.mxu0 0.0
  %321 = vmatprep.subr.mxu0 0.0
  %322 = vmatpush2.msra.mxu0 0.0
  %323 = vmatprep.subr.mxu0 0.0
  %324 = vmatpush2.msra.mxu0 0.0
  %325 = vmatprep.subr.mxu0 0.0
  %326 = vmatpush2.msra.mxu0 0.0
  %327 = vmatprep.subr.mxu0 0.0
  %328 = vmatpush2.msra.mxu0 0.0
  %329 = vmatprep.subr.mxu0 0.0
  %330 = vmatpush2.msra.mxu0 0.0
  %331 = vmatprep.subr.mxu0 0.0
  %332 = vmatpush2.msra.mxu0 0.0
  %333 = vmatprep.mubr.f32.mxu0 0.0
  %334 = vmatmul.mubr.f32.gmra.mxu0 %v267
  %v335 = vpop.f32.mrf.mxu0
  %v336 = vadd.f32 %v263, %v335
  %v337 = vpop.f32.mrf.mxu0
  %338 = vdwg.mxu0
  %339 = vxpose.xlu0.b32.start [1/16] %v336, 128
  %340 = vxpose.xlu0.b32.cont [2/16] 0.0, 128
  %341 = vxpose.xlu0.b32.cont [3/16] 0.0, 128
  %342 = vxpose.xlu0.b32.cont [4/16] 0.0, 128
  %343 = vxpose.xlu0.b32.cont [5/16] 0.0, 128
  %344 = vxpose.xlu0.b32.cont [6/16] 0.0, 128
  %345 = vxpose.xlu0.b32.cont [7/16] 0.0, 128
  %346 = vxpose.xlu0.b32.cont [8/16] 0.0, 128
  %347 = vxpose.xlu0.b32.cont [9/16] 0.0, 128
  %348 = vxpose.xlu0.b32.cont [10/16] 0.0, 128
  %349 = vxpose.xlu0.b32.cont [11/16] 0.0, 128
  %350 = vxpose.xlu0.b32.cont [12/16] 0.0, 128
  %351 = vxpose.xlu0.b32.cont [13/16] 0.0, 128
  %352 = vxpose.xlu0.b32.cont [14/16] 0.0, 128
  %353 = vxpose.xlu0.b32.cont [15/16] 0.0, 128
  %354 = vxpose.xlu0.b32.end [16/16] 0.0, 128
  %v355 = vpop.trf.xlu0
  %v356 = vpop.trf.xlu0
  %v357 = vpop.trf.xlu0
  %v358 = vpop.trf.xlu0
  %v359 = vpop.trf.xlu0
  %v360 = vpop.trf.xlu0
  %v361 = vpop.trf.xlu0
  %v362 = vpop.trf.xlu0
  %v363 = vpop.trf.xlu0
  %v364 = vpop.trf.xlu0
  %v365 = vpop.trf.xlu0
  %v366 = vpop.trf.xlu0
  %v367 = vpop.trf.xlu0
  %v368 = vpop.trf.xlu0
  %v369 = vpop.trf.xlu0
  %v370 = vpop.trf.xlu0
  %vm371 = vcmask 31744
  %372 = vst.msk [vmem:[%s7] sm:$0xff] %vm371, %v355
  // Predicated region
  $region30: #{binary_mlp.1} parent=0 // pred_check
    _
  $region31: #{binary_mlp.1} parent=0 // pred_check_branch
    %374 = sbr.rel (0) target = $region33
  $region32: #{binary_mlp.1} parent=0 // pred_region
    _
  $region33: #{binary_mlp.1} parent=0 // pred_fallthru
    _
  // Predicated region
  $region34: #{binary_mlp.1} parent=0 // pred_check
    _
  $region35: #{binary_mlp.1} parent=0 // pred_check_branch
    %376 = sbr.rel (0) target = $region37
  $region36: #{binary_mlp.1} parent=0 // pred_region
    _
  $region37: #{binary_mlp.1} parent=0 // pred_fallthru
    _

</llo_original>
